<compile_context>
chip_gen: v5e
topology: v5e:2x2
jax: 0.10.0
libtpu: 0.0.40
codegen_flags: <defaults>
</compile_context>

<pallas_src>
import jax
import jax.numpy as jnp
from jax.experimental import pallas as pl
from jax.experimental.pallas import tpu as pltpu


def _conv3x3_kernel(x_ref, w_ref, o_ref):
    # x_ref: (bn, H, W, C_in)   unpadded NHWC tile (reflection pad fused here)
    # w_ref: (9*C_in, C_out)    im2col weight, row index = (kh*3+kw)*C_in + c
    # o_ref: (bn, C_out, H*W)   lane-dense output (lane axis = H*W)
    bn, H, W, c_in = x_ref.shape
    c_out = o_ref.shape[1]
    M = bn * H * W

    x = x_ref[...]

    # Fused ReflectionPad2d(1): padded row/col -1 mirrors row/col 1,
    # padded row/col H / W mirrors row/col H-2 / W-2.
    xr = jnp.concatenate([x[:, 1:2], x, x[:, H - 2:H - 1]], axis=1)           # (bn,H+2,W,C)
    xp = jnp.concatenate([xr[:, :, 1:2], xr, xr[:, :, W - 2:W - 1]], axis=2)  # (bn,H+2,W+2,C)

    # im2col built in registers: 9 shifted taps concatenated along the lane
    # (K) axis -> ONE MXU matmul.  No VMEM scratch, no masked narrow stores.
    taps = [xp[:, kh:kh + H, kw:kw + W, :]
            for kh in range(3) for kw in range(3)]                            # each (bn,H,W,C)
    patches = jnp.concatenate(taps, axis=-1).reshape(M, 9 * c_in)             # (M, 9*C_in)

    acc = jnp.dot(patches, w_ref[...], preferred_element_type=jnp.float32)    # (M, C_out)

    # Store lane-dense (C_out, H*W) per batch element: the small
    # (H*W, C_out) -> (C_out, H*W) transpose rides the idle XLU; no C_out
    # lane padding, no 16x inflated HBM writeback.
    for b in range(bn):
        blk = acc[b * H * W:(b + 1) * H * W, :]
        o_ref[b] = blk.T.astype(o_ref.dtype)


def conv3x3(x_nchw, w_oihw, *, batch_block=1):
    """ReflectionPad2d(1) + Conv2d(k=3, stride=1, dilation=1, bias=False)."""
    N, C_in, H, W = x_nchw.shape
    C_out = w_oihw.shape[0]
    bn = batch_block
    assert N % bn == 0
    assert H >= 2 and W >= 2, "reflection pad of 1 needs at least 2 rows/cols"

    # NCHW -> NHWC so C_in sits on lanes and the spatial collapse inside the
    # kernel is layout-preserving.  Public API stays NCHW, like the module.
    x_nhwc = jnp.transpose(x_nchw, (0, 2, 3, 1))
    # OIHW -> (kh, kw, C_in, C_out) -> (9*C_in, C_out); row = (kh*3+kw)*C_in + c,
    # matching the kernel's tap concatenation order.
    w2d = jnp.transpose(w_oihw, (2, 3, 1, 0)).reshape(9 * C_in, C_out)

    out = pl.pallas_call(
        _conv3x3_kernel,
        out_shape=jax.ShapeDtypeStruct((N, C_out, H * W), x_nchw.dtype),
        grid=(N // bn,),
        in_specs=[
            pl.BlockSpec((bn, H, W, C_in), lambda b: (b, 0, 0, 0)),
            pl.BlockSpec((9 * C_in, C_out), lambda b: (0, 0)),
        ],
        out_specs=pl.BlockSpec((bn, C_out, H * W), lambda b: (b, 0, 0)),
        compiler_params=pltpu.CompilerParams(
            dimension_semantics=("parallel",)),
    )(x_nhwc, w2d)

    # (N, C_out, H*W) -> (N, C_out, H, W): pure metadata reshape, already NCHW.
    return out.reshape(N, C_out, H, W)


if __name__ == "__main__":
    key = jax.random.PRNGKey(0)
    k_x, k_w = jax.random.split(key)

    # Small shapes consistent with the module: batch=2, in_dim=4, out_dim=8, 16x16.
    N, C_in, C_out, H, W = 2, 4, 8, 16, 16

    x = jax.random.normal(k_x, (N, C_in, H, W), dtype=jnp.float32)

    # Conv2d(in_dim, out_dim, 3, bias=False) weight; mimic PyTorch's default
    # kaiming-uniform bound 1/sqrt(fan_in).
    fan_in = C_in * 3 * 3
    bound = 1.0 / (fan_in ** 0.5)
    w = jax.random.uniform(k_w, (C_out, C_in, 3, 3), jnp.float32, -bound, bound)

    out = conv3x3(x, w)
    out = jax.block_until_ready(out)
    assert out.shape == (N, C_out, H, W)

    # Pure-JAX reference: reflection pad + VALID conv in NCHW/OIHW.
    xp_ref = jnp.pad(x, ((0, 0), (0, 0), (1, 1), (1, 1)), mode="reflect")
    ref = jax.lax.conv_general_dilated(
        xp_ref, w, window_strides=(1, 1), padding="VALID",
        dimension_numbers=("NCHW", "OIHW", "NCHW"))
    assert jnp.allclose(out, ref, atol=1e-4, rtol=1e-4), "mismatch vs reference conv"

    print("KERNEL_OK")
</pallas_src>

<mosaic_0001>
module attributes {stable_mosaic.version = 11 : i64} {
  func.func @_conv3x3_kernel(%arg0: i32, %arg1: memref<1x16x16x4xf32, #tpu.memory_space<vmem>>, %arg2: memref<36x8xf32, #tpu.memory_space<vmem>>, %arg3: memref<1x8x256xf32, #tpu.memory_space<vmem>>) attributes {dimension_semantics = [#tpu.dimension_semantics<parallel>], iteration_bounds = array<i64: 2>, scalar_prefetch = 0 : i64, scratch_operands = 0 : i64, tpu.core_type = #tpu.core_type<tc>, window_params = [{transform_indices = @transform_0, window_bounds = array<i64: 1, 16, 16, 4>}, {pipeline_mode = #tpu.pipeline_mode<synchronous>, transform_indices = @transform_1, window_bounds = array<i64: 36, 8>}, {transform_indices = @transform_2, window_bounds = array<i64: 1, 8, 256>}]} {
    %c0 = arith.constant 0 : index
    %c0_0 = arith.constant 0 : index
    %c0_1 = arith.constant 0 : index
    %c0_2 = arith.constant 0 : index
    %0 = vector.load %arg1[%c0, %c0_0, %c0_1, %c0_2] : memref<1x16x16x4xf32, #tpu.memory_space<vmem>>, vector<1x16x16x4xf32>
    %1 = vector.extract_strided_slice %0 {offsets = [0, 1, 0, 0], sizes = [1, 1, 16, 4], strides = [1, 1, 1, 1]} : vector<1x16x16x4xf32> to vector<1x1x16x4xf32>
    %2 = vector.extract_strided_slice %0 {offsets = [0, 14, 0, 0], sizes = [1, 1, 16, 4], strides = [1, 1, 1, 1]} : vector<1x16x16x4xf32> to vector<1x1x16x4xf32>
    %3 = tpu.concatenate %1, %0, %2 in 1 : vector<1x1x16x4xf32>, vector<1x16x16x4xf32>, vector<1x1x16x4xf32> -> vector<1x18x16x4xf32>
    %4 = vector.extract_strided_slice %3 {offsets = [0, 0, 1, 0], sizes = [1, 18, 1, 4], strides = [1, 1, 1, 1]} : vector<1x18x16x4xf32> to vector<1x18x1x4xf32>
    %5 = vector.extract_strided_slice %3 {offsets = [0, 0, 14, 0], sizes = [1, 18, 1, 4], strides = [1, 1, 1, 1]} : vector<1x18x16x4xf32> to vector<1x18x1x4xf32>
    %6 = tpu.concatenate %4, %3, %5 in 2 : vector<1x18x1x4xf32>, vector<1x18x16x4xf32>, vector<1x18x1x4xf32> -> vector<1x18x18x4xf32>
    %7 = vector.extract_strided_slice %6 {offsets = [0, 0, 0, 0], sizes = [1, 16, 16, 4], strides = [1, 1, 1, 1]} : vector<1x18x18x4xf32> to vector<1x16x16x4xf32>
    %8 = vector.extract_strided_slice %6 {offsets = [0, 0, 1, 0], sizes = [1, 16, 16, 4], strides = [1, 1, 1, 1]} : vector<1x18x18x4xf32> to vector<1x16x16x4xf32>
    %9 = vector.extract_strided_slice %6 {offsets = [0, 0, 2, 0], sizes = [1, 16, 16, 4], strides = [1, 1, 1, 1]} : vector<1x18x18x4xf32> to vector<1x16x16x4xf32>
    %10 = vector.extract_strided_slice %6 {offsets = [0, 1, 0, 0], sizes = [1, 16, 16, 4], strides = [1, 1, 1, 1]} : vector<1x18x18x4xf32> to vector<1x16x16x4xf32>
    %11 = vector.extract_strided_slice %6 {offsets = [0, 1, 1, 0], sizes = [1, 16, 16, 4], strides = [1, 1, 1, 1]} : vector<1x18x18x4xf32> to vector<1x16x16x4xf32>
    %12 = vector.extract_strided_slice %6 {offsets = [0, 1, 2, 0], sizes = [1, 16, 16, 4], strides = [1, 1, 1, 1]} : vector<1x18x18x4xf32> to vector<1x16x16x4xf32>
    %13 = vector.extract_strided_slice %6 {offsets = [0, 2, 0, 0], sizes = [1, 16, 16, 4], strides = [1, 1, 1, 1]} : vector<1x18x18x4xf32> to vector<1x16x16x4xf32>
    %14 = vector.extract_strided_slice %6 {offsets = [0, 2, 1, 0], sizes = [1, 16, 16, 4], strides = [1, 1, 1, 1]} : vector<1x18x18x4xf32> to vector<1x16x16x4xf32>
    %15 = vector.extract_strided_slice %6 {offsets = [0, 2, 2, 0], sizes = [1, 16, 16, 4], strides = [1, 1, 1, 1]} : vector<1x18x18x4xf32> to vector<1x16x16x4xf32>
    %16 = tpu.concatenate %7, %8, %9, %10, %11, %12, %13, %14, %15 in 3 : vector<1x16x16x4xf32>, vector<1x16x16x4xf32>, vector<1x16x16x4xf32>, vector<1x16x16x4xf32>, vector<1x16x16x4xf32>, vector<1x16x16x4xf32>, vector<1x16x16x4xf32>, vector<1x16x16x4xf32>, vector<1x16x16x4xf32> -> vector<1x16x16x36xf32>
    %17 = vector.shape_cast %16 : vector<1x16x16x36xf32> to vector<256x36xf32>
    %c0_3 = arith.constant 0 : index
    %c0_4 = arith.constant 0 : index
    %18 = vector.load %arg2[%c0_3, %c0_4] : memref<36x8xf32, #tpu.memory_space<vmem>>, vector<36x8xf32>
    %cst = arith.constant dense<0.000000e+00> : vector<256x8xf32>
    %19 = tpu.matmul %17, %18, %cst {dimension_numbers = #tpu.dot_dimension_numbers<[1], [0], [0], [1], [0, 0, 1, 1], [], []>} : vector<256x36xf32>, vector<36x8xf32>, vector<256x8xf32> -> vector<256x8xf32>
    %20 = tpu.transpose %19, [1, 0] : vector<256x8xf32> -> vector<8x256xf32>
    %c0_5 = arith.constant 0 : index
    %c0_6 = arith.constant 0 : index
    %c0_7 = arith.constant 0 : index
    %21 = vector.load %arg3[%c0_5, %c0_6, %c0_7] : memref<1x8x256xf32, #tpu.memory_space<vmem>>, vector<1x8x256xf32>
    %22 = vector.shape_cast %21 : vector<1x8x256xf32> to vector<8x256xf32>
    %23 = vector.shape_cast %20 : vector<8x256xf32> to vector<1x8x256xf32>
    tpu.vector_store %arg3[%c0_5, %c0_6, %c0_7], %23 {strides = array<i32>} : memref<1x8x256xf32, #tpu.memory_space<vmem>>, vector<1x8x256xf32>,
    return
  }
  func.func @transform_0(%arg0: i32) -> (i32, i32, i32, i32) {
    %c0_i32 = arith.constant 0 : i32
    %c0_i32_0 = arith.constant 0 : i32
    %c0_i32_1 = arith.constant 0 : i32
    %c0_i32_2 = arith.constant 0 : i32
    return %arg0, %c0_i32, %c0_i32_0, %c0_i32_1 : i32, i32, i32, i32
  }
  func.func @transform_1(%arg0: i32) -> (i32, i32) {
    %c0_i32 = arith.constant 0 : i32
    %c0_i32_0 = arith.constant 0 : i32
    %c0_i32_1 = arith.constant 0 : i32
    return %c0_i32, %c0_i32_0 : i32, i32
  }
  func.func @transform_2(%arg0: i32) -> (i32, i32, i32) {
    %c0_i32 = arith.constant 0 : i32
    %c0_i32_0 = arith.constant 0 : i32
    %c0_i32_1 = arith.constant 0 : i32
    return %arg0, %c0_i32, %c0_i32_0 : i32, i32, i32
  }
}

</mosaic_0001>

<llo_original>
// kernel: tpu_custom_call.1
$region0: #{tpu_custom_call.1}
  #allocation0 [shape = 'u32[]', space=smem, size = 0x4, offset = 0x4, fixed_abs, tag = 'smem constant byte address 0x4 - core index']
  #allocation1 [shape = 'u32[72,128]{1,0:T(1,128)}', space=vmem, size = 0x9000, scoped, tag = 'internal scratch']
  %s0 = inlined_call_operand.vmem [shape: f32[2,16,16,4], index: 0, kind: input, shape index: {}]
  %s1 = inlined_call_operand.vmem [shape: f32[36,8], index: 1, kind: input, shape index: {}]
  %s2 = inlined_call_operand.hbm [shape: f32[2,8,256], index: 2, kind: output, shape index: {}]
  %s3 = sld [smem:[#allocation0]]
  $region41: #{tpu_custom_call.1} parent=0
    _
  %s5 = ssub.s32 1, %s3
  %s6 = scalar_select 0, %s5, %s3
  $region1: #{tpu_custom_call.1} parent=0
    #allocation2 [shape = 'u8[16384]{0}', space=vmem, size = 0x4000, scoped, tag = 'output window, operand 0']
    #allocation3 [shape = 's32[2]{0}', space=sflag, size = 0x8, scoped, tag = 'scoped memory for tpu_custom_call.1']
    %7 = vsyncpa [#allocation3], 0
    %s8 = scalar_lea.sflag [#allocation3], 1
    %9 = vsyncpa %s8, 0
    loop: start=0, step=1, limit=4
    $region2: #{tpu_custom_call.1} parent=1 // loop_pre_header
      _
    $region3: #{tpu_custom_call.1} parent=1 // loop_header
      %s11 = sphi 0, %s15
      %p12 = scmp.ge.s32.totalorder %s11, 4
      %s21 = sphi 0, %s23
      %s24 = sphi 0, %s21
      %s25 = sphi 0, %s24
      %s41 = sphi 0, %s25
      %s45 = sphi 0, %s45
      %s47 = sphi 0, %s45
      %s48 = sphi 0, %s47
      %s62 = sphi 0, %s48
      %s68 = sphi 0, %s70
      %s71 = sphi 0, %s68
      %s72 = sphi 0, %s71
      %s88 = sphi 0, %s72
    $region4: #{tpu_custom_call.1} parent=1 // loop_header_branch
      %14 = sbr.rel (%p12) target = $region8
    $region5: #{tpu_custom_call.1} parent=1 // loop_body
      %s16 = ssub.s32 %s11, 1
      %s17 = ssub.s32 %s11, 2
      %s18 = sadd.s32 %s11, 1
      %s19 = ssub.s32 %s11, %s18
      %p20 = scmp.eq.s32.totalorder %s19, 0
      %s22 = sadd.s32 %s21, 1
      %s23 = scalar_select %p20, %s21, %s22
      %p26 = pneg %p20
      %p27 = scmp.eq.s32.totalorder %s11, 1
      %p28 = por %p26, %p27
      %p29 = scmp.ne.s32.totalorder %s21, %s24
      %p30 = scmp.eq.s32.totalorder %s11, 0
      %p31 = por %p29, %p30
      %p32 = scmp.ne.s32.totalorder %s21, %s24
      %p33 = scmp.eq.s32.totalorder %s16, 1
      %p34 = por %p32, %p33
      %p35 = scmp.ne.s32.totalorder %s24, %s25
      %p36 = scmp.eq.s32.totalorder %s16, 0
      %p37 = por %p35, %p36
      %p38 = scmp.ne.s32.totalorder %s24, %s25
      %p39 = scmp.eq.s32.totalorder %s17, 1
      %p40 = por %p38, %p39
      %p42 = scmp.ne.s32.totalorder %s25, %s41
      %p43 = scmp.eq.s32.totalorder %s17, 0
      %p44 = por %p42, %p43
      %s46 = sadd.s32 %s45, 1
      %p49 = scmp.eq.s32.totalorder %s11, 1
      %p50 = scmp.ne.s32.totalorder %s45, %s47
      %p51 = scmp.eq.s32.totalorder %s11, 0
      %p52 = por %p50, %p51
      %p53 = scmp.ne.s32.totalorder %s45, %s47
      %p54 = scmp.eq.s32.totalorder %s16, 1
      %p55 = por %p53, %p54
      %p56 = scmp.ne.s32.totalorder %s47, %s48
      %p57 = scmp.eq.s32.totalorder %s16, 0
      %p58 = por %p56, %p57
      %p59 = scmp.ne.s32.totalorder %s47, %s48
      %p60 = scmp.eq.s32.totalorder %s17, 1
      %p61 = por %p59, %p60
      %p63 = scmp.ne.s32.totalorder %s48, %s62
      %p64 = scmp.eq.s32.totalorder %s17, 0
      %p65 = por %p63, %p64
      %s66 = ssub.s32 %s11, %s18
      %p67 = scmp.eq.s32.totalorder %s66, 0
      %s69 = sadd.s32 %s68, 1
      %s70 = scalar_select %p67, %s68, %s69
      %p73 = pneg %p67
      %p74 = scmp.eq.s32.totalorder %s11, 1
      %p75 = por %p73, %p74
      %p76 = scmp.ne.s32.totalorder %s68, %s71
      %p77 = scmp.eq.s32.totalorder %s11, 0
      %p78 = por %p76, %p77
      %p79 = scmp.ne.s32.totalorder %s68, %s71
      %p80 = scmp.eq.s32.totalorder %s16, 1
      %p81 = por %p79, %p80
      %p82 = scmp.ne.s32.totalorder %s71, %s72
      %p83 = scmp.eq.s32.totalorder %s16, 0
      %p84 = por %p82, %p83
      %p85 = scmp.ne.s32.totalorder %s71, %s72
      %p86 = scmp.eq.s32.totalorder %s17, 1
      %p87 = por %p85, %p86
      %p89 = scmp.ne.s32.totalorder %s72, %s88
      %p90 = scmp.eq.s32.totalorder %s17, 0
      %p91 = por %p89, %p90
      %p92 = scmp.le.s32.totalorder 1, %s11
      %p93 = scmp.lt.s32.totalorder %s11, 3
      %p94 = pnand %p92, %p93
      %p95 = pneg %p94
      // Predicated region
      $region9: #{tpu_custom_call.1} parent=5 // pred_check
        _
      $region10: #{tpu_custom_call.1} parent=5 // pred_check_branch
        %97 = sbr.rel (%p94) target = $region12
      $region11: #{tpu_custom_call.1} parent=5 // pred_region
        %s98 = ssub.s32 %s11, 1
        // Predicated region
        $region13: #{tpu_custom_call.1} parent=11 // pred_check
          %p99 = pneg %p58
        $region14: #{tpu_custom_call.1} parent=11 // pred_check_branch
          %101 = sbr.rel (%p99) target = $region16
        $region15: #{tpu_custom_call.1} parent=11 // pred_region
          _
        $region16: #{tpu_custom_call.1} parent=11 // pred_fallthru
          _
      $region12: #{tpu_custom_call.1} parent=5 // pred_fallthru
        _
      %p102 = scmp.lt.s32.totalorder %s11, 2
      // Predicated region
      $region17: #{tpu_custom_call.1} parent=5 // pred_check
        %p103 = pneg %p102
      $region18: #{tpu_custom_call.1} parent=5 // pred_check_branch
        %105 = sbr.rel (%p103) target = $region20
      $region19: #{tpu_custom_call.1} parent=5 // pred_region
        // Predicated region
        $region21: #{tpu_custom_call.1} parent=19 // pred_check
          %p106 = pneg %p31
        $region22: #{tpu_custom_call.1} parent=19 // pred_check_branch
          %108 = sbr.rel (%p106) target = $region24
        $region23: #{tpu_custom_call.1} parent=19 // pred_region
          %p109 = scmp.lt.s32.totalorder %s11, 1
          %s110 = scalar_select %p109, %s11, 1
          %s111 = smul.addr %s110, 32
          %s112 = smul.addr %s111, 8
          %s113 = scalar_lea.vmem %s0, %s112
        $region24: #{tpu_custom_call.1} parent=19 // pred_fallthru
          _
      $region20: #{tpu_custom_call.1} parent=5 // pred_fallthru
        _
      %p114 = scmp.le.s32.totalorder 1, %s11
      %p115 = scmp.lt.s32.totalorder %s11, 3
      %p116 = pnand %p114, %p115
      %p117 = pneg %p116
      // Predicated region
      $region25: #{tpu_custom_call.1} parent=5 // pred_check
        _
      $region26: #{tpu_custom_call.1} parent=5 // pred_check_branch
        %119 = sbr.rel (%p116) target = $region28
      $region27: #{tpu_custom_call.1} parent=5 // pred_region
        %s120 = ssub.s32 %s11, 1
        %p121 = scmp.lt.s32.totalorder %s16, 1
        %s122 = scalar_select %p121, %s16, 1
        %s123 = smul.addr %s122, 32
        %s124 = smul.addr %s123, 8
        %s125 = scalar_lea.vmem %s0, %s124
        %p126 = pneg %p37
        %p127 = pneg %p34
        %p128 = pneg %p58
        %p129 = pneg %p55
        %p130 = pneg %p84
        %p131 = pneg %p81
        %s132 = sand.u32 %s71, 1
        %s133 = scalar_lea.sflag [#allocation3], %s132
        %s134 = sand.u32 %s71, 1
        %s135 = smul.addr %s134, 16
        %s136 = scalar_lea.vmem [#allocation2], %s135
        %p137 = scmp.lt.s32.totalorder %s16, 1
        %s138 = scalar_select %p137, %s16, 1
        %s139 = smul.addr %s138, 32
        %s140 = smul.addr %s139, 8
        %s141 = scalar_lea.vmem %s0, %s140
        %v142 = vld [vmem:[%s141] sm:$0xff]
        %v143 = vld [vmem:[%s141 + $0x8] sm:$0xff]
        %v144 = vld [vmem:[%s141 + $0x10] sm:$0xff]
        %v145 = vld [vmem:[%s141 + $0x18] sm:$0xff]
        %v146 = vld [vmem:[%s141 + $0x20] sm:$0xff]
        %v147 = vld [vmem:[%s141 + $0x28] sm:$0xff]
        %v148 = vld [vmem:[%s141 + $0x30] sm:$0xff]
        %v149 = vld [vmem:[%s141 + $0x38] sm:$0xff]
        %v150 = vld [vmem:[%s141 + $0x40] sm:$0xff]
        %v151 = vld [vmem:[%s141 + $0x48] sm:$0xff]
        %v152 = vld [vmem:[%s141 + $0x50] sm:$0xff]
        %v153 = vld [vmem:[%s141 + $0x58] sm:$0xff]
        %v154 = vld [vmem:[%s141 + $0x60] sm:$0xff]
        %v155 = vld [vmem:[%s141 + $0x68] sm:$0xff]
        %v156 = vld [vmem:[%s141 + $0x70] sm:$0xff]
        %v157 = vld [vmem:[%s141 + $0x78] sm:$0xff]
        %v158 = vld [vmem:[%s141 + $0x80] sm:$0xff]
        %v159 = vld [vmem:[%s141 + $0x88] sm:$0xff]
        %v160 = vld [vmem:[%s141 + $0x90] sm:$0xff]
        %v161 = vld [vmem:[%s141 + $0x98] sm:$0xff]
        %v162 = vld [vmem:[%s141 + $0xa0] sm:$0xff]
        %v163 = vld [vmem:[%s141 + $0xa8] sm:$0xff]
        %v164 = vld [vmem:[%s141 + $0xb0] sm:$0xff]
        %v165 = vld [vmem:[%s141 + $0xb8] sm:$0xff]
        %v166 = vld [vmem:[%s141 + $0xc0] sm:$0xff]
        %v167 = vld [vmem:[%s141 + $0xc8] sm:$0xff]
        %v168 = vld [vmem:[%s141 + $0xd0] sm:$0xff]
        %v169 = vld [vmem:[%s141 + $0xd8] sm:$0xff]
        %v170 = vld [vmem:[%s141 + $0xe0] sm:$0xff]
        %v171 = vld [vmem:[%s141 + $0xe8] sm:$0xff]
        %v172 = vld [vmem:[%s141 + $0xf0] sm:$0xff]
        %v173 = vld [vmem:[%s141 + $0xf8] sm:$0xff]
        %v190 = vrot.slane %v144, 1
        %v191 = vrot.slane %v142, 1
        %v192 = vrot.slane %v146, 1
        %v193 = vrot.slane %v148, 1
        %v194 = vrot.slane %v150, 1
        %v195 = vrot.slane %v152, 1
        %v196 = vrot.slane %v154, 1
        %v197 = vrot.slane %v156, 1
        %v198 = vrot.slane %v158, 1
        %v199 = vrot.slane %v160, 1
        %v200 = vrot.slane %v162, 1
        %v201 = vrot.slane %v164, 1
        %v202 = vrot.slane %v166, 1
        %v203 = vrot.slane %v168, 1
        %v204 = vrot.slane %v170, 1
        %v205 = vrot.slane %v172, 1
        %vm238 = vcmask 1040384
        %v239 = vrot.slane %v144, 7
        %v240 = vrot.slane %v145, 7
        %v241 = vsel %vm238, %v239, %v240
        %v242 = vrot.slane %v142, 7
        %v243 = vrot.slane %v143, 7
        %v244 = vsel %vm238, %v242, %v243
        %v245 = vrot.slane %v146, 7
        %v246 = vrot.slane %v147, 7
        %v247 = vsel %vm238, %v245, %v246
        %v248 = vrot.slane %v148, 7
        %v249 = vrot.slane %v149, 7
        %v250 = vsel %vm238, %v248, %v249
        %v251 = vrot.slane %v150, 7
        %v252 = vrot.slane %v151, 7
        %v253 = vsel %vm238, %v251, %v252
        %v254 = vrot.slane %v152, 7
        %v255 = vrot.slane %v153, 7
        %v256 = vsel %vm238, %v254, %v255
        %v257 = vrot.slane %v154, 7
        %v258 = vrot.slane %v155, 7
        %v259 = vsel %vm238, %v257, %v258
        %v260 = vrot.slane %v156, 7
        %v261 = vrot.slane %v157, 7
        %v262 = vsel %vm238, %v260, %v261
        %v263 = vrot.slane %v158, 7
        %v264 = vrot.slane %v159, 7
        %v265 = vsel %vm238, %v263, %v264
        %v266 = vrot.slane %v160, 7
        %v267 = vrot.slane %v161, 7
        %v268 = vsel %vm238, %v266, %v267
        %v269 = vrot.slane %v162, 7
        %v270 = vrot.slane %v163, 7
        %v271 = vsel %vm238, %v269, %v270
        %v272 = vrot.slane %v164, 7
        %v273 = vrot.slane %v165, 7
        %v274 = vsel %vm238, %v272, %v273
        %v275 = vrot.slane %v166, 7
        %v276 = vrot.slane %v167, 7
        %v277 = vsel %vm238, %v275, %v276
        %v278 = vrot.slane %v168, 7
        %v279 = vrot.slane %v169, 7
        %v280 = vsel %vm238, %v278, %v279
        %v281 = vrot.slane %v170, 7
        %v282 = vrot.slane %v171, 7
        %v283 = vsel %vm238, %v281, %v282
        %v284 = vrot.slane %v172, 7
        %v285 = vrot.slane %v173, 7
        %v286 = vsel %vm238, %v284, %v285
        %v334 = vrot.slane %v145, 5
        %v335 = vrot.slane %v143, 5
        %v336 = vrot.slane %v147, 5
        %v337 = vrot.slane %v149, 5
        %v338 = vrot.slane %v151, 5
        %v339 = vrot.slane %v153, 5
        %v340 = vrot.slane %v155, 5
        %v341 = vrot.slane %v157, 5
        %v342 = vrot.slane %v159, 5
        %v343 = vrot.slane %v161, 5
        %v344 = vrot.slane %v163, 5
        %v345 = vrot.slane %v165, 5
        %v346 = vrot.slane %v167, 5
        %v347 = vrot.slane %v169, 5
        %v348 = vrot.slane %v171, 5
        %v349 = vrot.slane %v173, 5
        %v366 = vsel %vm238, %v190, %v239
        %v367 = vsel %vm238, %v191, %v242
        %v368 = vsel %vm238, %v192, %v245
        %v369 = vsel %vm238, %v193, %v248
        %v370 = vsel %vm238, %v194, %v251
        %v371 = vsel %vm238, %v195, %v254
        %v372 = vsel %vm238, %v196, %v257
        %v373 = vsel %vm238, %v197, %v260
        %v374 = vsel %vm238, %v198, %v263
        %v375 = vsel %vm238, %v199, %v266
        %v376 = vsel %vm238, %v200, %v269
        %v377 = vsel %vm238, %v201, %v272
        %v378 = vsel %vm238, %v202, %v275
        %v379 = vsel %vm238, %v203, %v278
        %v380 = vsel %vm238, %v204, %v281
        %v381 = vsel %vm238, %v205, %v284
        %v382 = vsel %vm238, %v240, %v334
        %v383 = vsel %vm238, %v243, %v335
        %v384 = vsel %vm238, %v246, %v336
        %v385 = vsel %vm238, %v249, %v337
        %v386 = vsel %vm238, %v252, %v338
        %v387 = vsel %vm238, %v255, %v339
        %v388 = vsel %vm238, %v258, %v340
        %v389 = vsel %vm238, %v261, %v341
        %v390 = vsel %vm238, %v264, %v342
        %v391 = vsel %vm238, %v267, %v343
        %v392 = vsel %vm238, %v270, %v344
        %v393 = vsel %vm238, %v273, %v345
        %v394 = vsel %vm238, %v276, %v346
        %v395 = vsel %vm238, %v279, %v347
        %v396 = vsel %vm238, %v282, %v348
        %v397 = vsel %vm238, %v285, %v349
        %vm428 = vcmask 1046528
        %v429 = vrot.slane %v366, 1
        %v430 = vrot.slane %v241, 1
        %v431 = vsel %vm428, %v429, %v430
        %v432 = vrot.slane %v382, 1
        %v433 = vsel %vm428, %v430, %v432
        %v434 = vrot.slane %v367, 1
        %v435 = vrot.slane %v244, 1
        %v436 = vsel %vm428, %v434, %v435
        %v437 = vrot.slane %v383, 1
        %v438 = vsel %vm428, %v435, %v437
        %v439 = vrot.slane %v368, 1
        %v440 = vrot.slane %v247, 1
        %v441 = vsel %vm428, %v439, %v440
        %v442 = vrot.slane %v384, 1
        %v443 = vsel %vm428, %v440, %v442
        %v444 = vrot.slane %v369, 1
        %v445 = vrot.slane %v250, 1
        %v446 = vsel %vm428, %v444, %v445
        %v447 = vrot.slane %v385, 1
        %v448 = vsel %vm428, %v445, %v447
        %v449 = vrot.slane %v370, 1
        %v450 = vrot.slane %v253, 1
        %v451 = vsel %vm428, %v449, %v450
        %v452 = vrot.slane %v386, 1
        %v453 = vsel %vm428, %v450, %v452
        %v454 = vrot.slane %v371, 1
        %v455 = vrot.slane %v256, 1
        %v456 = vsel %vm428, %v454, %v455
        %v457 = vrot.slane %v387, 1
        %v458 = vsel %vm428, %v455, %v457
        %v459 = vrot.slane %v372, 1
        %v460 = vrot.slane %v259, 1
        %v461 = vsel %vm428, %v459, %v460
        %v462 = vrot.slane %v388, 1
        %v463 = vsel %vm428, %v460, %v462
        %v464 = vrot.slane %v373, 1
        %v465 = vrot.slane %v262, 1
        %v466 = vsel %vm428, %v464, %v465
        %v467 = vrot.slane %v389, 1
        %v468 = vsel %vm428, %v465, %v467
        %v469 = vrot.slane %v374, 1
        %v470 = vrot.slane %v265, 1
        %v471 = vsel %vm428, %v469, %v470
        %v472 = vrot.slane %v390, 1
        %v473 = vsel %vm428, %v470, %v472
        %v474 = vrot.slane %v375, 1
        %v475 = vrot.slane %v268, 1
        %v476 = vsel %vm428, %v474, %v475
        %v477 = vrot.slane %v391, 1
        %v478 = vsel %vm428, %v475, %v477
        %v479 = vrot.slane %v376, 1
        %v480 = vrot.slane %v271, 1
        %v481 = vsel %vm428, %v479, %v480
        %v482 = vrot.slane %v392, 1
        %v483 = vsel %vm428, %v480, %v482
        %v484 = vrot.slane %v377, 1
        %v485 = vrot.slane %v274, 1
        %v486 = vsel %vm428, %v484, %v485
        %v487 = vrot.slane %v393, 1
        %v488 = vsel %vm428, %v485, %v487
        %v489 = vrot.slane %v378, 1
        %v490 = vrot.slane %v277, 1
        %v491 = vsel %vm428, %v489, %v490
        %v492 = vrot.slane %v394, 1
        %v493 = vsel %vm428, %v490, %v492
        %v494 = vrot.slane %v379, 1
        %v495 = vrot.slane %v280, 1
        %v496 = vsel %vm428, %v494, %v495
        %v497 = vrot.slane %v395, 1
        %v498 = vsel %vm428, %v495, %v497
        %v499 = vrot.slane %v380, 1
        %v500 = vrot.slane %v283, 1
        %v501 = vsel %vm428, %v499, %v500
        %v502 = vrot.slane %v396, 1
        %v503 = vsel %vm428, %v500, %v502
        %504 = vrot.lane.b32.xlu0 %v431, 4
        %v505 = vpop.permute.xlu0 %504
        %506 = vrot.lane.b32.xlu0 %v433, 4
        %v507 = vpop.permute.xlu0 %506
        %508 = vrot.lane.b32.xlu0 %v436, 4
        %v509 = vpop.permute.xlu0 %508
        %510 = vrot.lane.b32.xlu0 %v438, 4
        %v511 = vpop.permute.xlu0 %510
        %512 = vrot.lane.b32.xlu0 %v441, 4
        %v513 = vpop.permute.xlu0 %512
        %514 = vrot.lane.b32.xlu0 %v443, 4
        %v515 = vpop.permute.xlu0 %514
        %516 = vrot.lane.b32.xlu0 %v446, 4
        %v517 = vpop.permute.xlu0 %516
        %518 = vrot.lane.b32.xlu0 %v448, 4
        %v519 = vpop.permute.xlu0 %518
        %520 = vrot.lane.b32.xlu0 %v451, 4
        %v521 = vpop.permute.xlu0 %520
        %522 = vrot.lane.b32.xlu0 %v453, 4
        %v523 = vpop.permute.xlu0 %522
        %524 = vrot.lane.b32.xlu0 %v456, 4
        %v525 = vpop.permute.xlu0 %524
        %526 = vrot.lane.b32.xlu0 %v458, 4
        %v527 = vpop.permute.xlu0 %526
        %528 = vrot.lane.b32.xlu0 %v461, 4
        %v529 = vpop.permute.xlu0 %528
        %530 = vrot.lane.b32.xlu0 %v463, 4
        %v531 = vpop.permute.xlu0 %530
        %532 = vrot.lane.b32.xlu0 %v466, 4
        %v533 = vpop.permute.xlu0 %532
        %534 = vrot.lane.b32.xlu0 %v468, 4
        %v535 = vpop.permute.xlu0 %534
        %536 = vrot.lane.b32.xlu0 %v471, 4
        %v537 = vpop.permute.xlu0 %536
        %538 = vrot.lane.b32.xlu0 %v473, 4
        %v539 = vpop.permute.xlu0 %538
        %540 = vrot.lane.b32.xlu0 %v476, 4
        %v541 = vpop.permute.xlu0 %540
        %542 = vrot.lane.b32.xlu0 %v478, 4
        %v543 = vpop.permute.xlu0 %542
        %544 = vrot.lane.b32.xlu0 %v481, 4
        %v545 = vpop.permute.xlu0 %544
        %546 = vrot.lane.b32.xlu0 %v483, 4
        %v547 = vpop.permute.xlu0 %546
        %548 = vrot.lane.b32.xlu0 %v486, 4
        %v549 = vpop.permute.xlu0 %548
        %550 = vrot.lane.b32.xlu0 %v488, 4
        %v551 = vpop.permute.xlu0 %550
        %552 = vrot.lane.b32.xlu0 %v491, 4
        %v553 = vpop.permute.xlu0 %552
        %554 = vrot.lane.b32.xlu0 %v493, 4
        %v555 = vpop.permute.xlu0 %554
        %556 = vrot.lane.b32.xlu0 %v496, 4
        %v557 = vpop.permute.xlu0 %556
        %558 = vrot.lane.b32.xlu0 %v498, 4
        %v559 = vpop.permute.xlu0 %558
        %560 = vrot.lane.b32.xlu0 %v501, 4
        %v561 = vpop.permute.xlu0 %560
        %562 = vrot.lane.b32.xlu0 %v503, 4
        %v563 = vpop.permute.xlu0 %562
        %vm594 = vcmask 1045504
        %v595 = vrot.slane %v366, 2
        %v596 = vrot.slane %v241, 2
        %v597 = vsel %vm594, %v595, %v596
        %v598 = vrot.slane %v382, 2
        %v599 = vsel %vm594, %v596, %v598
        %v600 = vrot.slane %v367, 2
        %v601 = vrot.slane %v244, 2
        %v602 = vsel %vm594, %v600, %v601
        %v603 = vrot.slane %v383, 2
        %v604 = vsel %vm594, %v601, %v603
        %v605 = vrot.slane %v368, 2
        %v606 = vrot.slane %v247, 2
        %v607 = vsel %vm594, %v605, %v606
        %v608 = vrot.slane %v384, 2
        %v609 = vsel %vm594, %v606, %v608
        %v610 = vrot.slane %v369, 2
        %v611 = vrot.slane %v250, 2
        %v612 = vsel %vm594, %v610, %v611
        %v613 = vrot.slane %v385, 2
        %v614 = vsel %vm594, %v611, %v613
        %v615 = vrot.slane %v370, 2
        %v616 = vrot.slane %v253, 2
        %v617 = vsel %vm594, %v615, %v616
        %v618 = vrot.slane %v386, 2
        %v619 = vsel %vm594, %v616, %v618
        %v620 = vrot.slane %v371, 2
        %v621 = vrot.slane %v256, 2
        %v622 = vsel %vm594, %v620, %v621
        %v623 = vrot.slane %v387, 2
        %v624 = vsel %vm594, %v621, %v623
        %v625 = vrot.slane %v372, 2
        %v626 = vrot.slane %v259, 2
        %v627 = vsel %vm594, %v625, %v626
        %v628 = vrot.slane %v388, 2
        %v629 = vsel %vm594, %v626, %v628
        %v630 = vrot.slane %v373, 2
        %v631 = vrot.slane %v262, 2
        %v632 = vsel %vm594, %v630, %v631
        %v633 = vrot.slane %v389, 2
        %v634 = vsel %vm594, %v631, %v633
        %v635 = vrot.slane %v374, 2
        %v636 = vrot.slane %v265, 2
        %v637 = vsel %vm594, %v635, %v636
        %v638 = vrot.slane %v390, 2
        %v639 = vsel %vm594, %v636, %v638
        %v640 = vrot.slane %v375, 2
        %v641 = vrot.slane %v268, 2
        %v642 = vsel %vm594, %v640, %v641
        %v643 = vrot.slane %v391, 2
        %v644 = vsel %vm594, %v641, %v643
        %v645 = vrot.slane %v376, 2
        %v646 = vrot.slane %v271, 2
        %v647 = vsel %vm594, %v645, %v646
        %v648 = vrot.slane %v392, 2
        %v649 = vsel %vm594, %v646, %v648
        %v650 = vrot.slane %v377, 2
        %v651 = vrot.slane %v274, 2
        %v652 = vsel %vm594, %v650, %v651
        %v653 = vrot.slane %v393, 2
        %v654 = vsel %vm594, %v651, %v653
        %v655 = vrot.slane %v378, 2
        %v656 = vrot.slane %v277, 2
        %v657 = vsel %vm594, %v655, %v656
        %v658 = vrot.slane %v394, 2
        %v659 = vsel %vm594, %v656, %v658
        %v660 = vrot.slane %v379, 2
        %v661 = vrot.slane %v280, 2
        %v662 = vsel %vm594, %v660, %v661
        %v663 = vrot.slane %v395, 2
        %v664 = vsel %vm594, %v661, %v663
        %v665 = vrot.slane %v380, 2
        %v666 = vrot.slane %v283, 2
        %v667 = vsel %vm594, %v665, %v666
        %v668 = vrot.slane %v396, 2
        %v669 = vsel %vm594, %v666, %v668
        %670 = vrot.lane.b32.xlu0 %v597, 8
        %v671 = vpop.permute.xlu0 %670
        %672 = vrot.lane.b32.xlu0 %v599, 8
        %v673 = vpop.permute.xlu0 %672
        %674 = vrot.lane.b32.xlu0 %v602, 8
        %v675 = vpop.permute.xlu0 %674
        %676 = vrot.lane.b32.xlu0 %v604, 8
        %v677 = vpop.permute.xlu0 %676
        %678 = vrot.lane.b32.xlu0 %v607, 8
        %v679 = vpop.permute.xlu0 %678
        %680 = vrot.lane.b32.xlu0 %v609, 8
        %v681 = vpop.permute.xlu0 %680
        %682 = vrot.lane.b32.xlu0 %v612, 8
        %v683 = vpop.permute.xlu0 %682
        %684 = vrot.lane.b32.xlu0 %v614, 8
        %v685 = vpop.permute.xlu0 %684
        %686 = vrot.lane.b32.xlu0 %v617, 8
        %v687 = vpop.permute.xlu0 %686
        %688 = vrot.lane.b32.xlu0 %v619, 8
        %v689 = vpop.permute.xlu0 %688
        %690 = vrot.lane.b32.xlu0 %v622, 8
        %v691 = vpop.permute.xlu0 %690
        %692 = vrot.lane.b32.xlu0 %v624, 8
        %v693 = vpop.permute.xlu0 %692
        %694 = vrot.lane.b32.xlu0 %v627, 8
        %v695 = vpop.permute.xlu0 %694
        %696 = vrot.lane.b32.xlu0 %v629, 8
        %v697 = vpop.permute.xlu0 %696
        %698 = vrot.lane.b32.xlu0 %v632, 8
        %v699 = vpop.permute.xlu0 %698
        %700 = vrot.lane.b32.xlu0 %v634, 8
        %v701 = vpop.permute.xlu0 %700
        %702 = vrot.lane.b32.xlu0 %v637, 8
        %v703 = vpop.permute.xlu0 %702
        %704 = vrot.lane.b32.xlu0 %v639, 8
        %v705 = vpop.permute.xlu0 %704
        %706 = vrot.lane.b32.xlu0 %v642, 8
        %v707 = vpop.permute.xlu0 %706
        %708 = vrot.lane.b32.xlu0 %v644, 8
        %v709 = vpop.permute.xlu0 %708
        %710 = vrot.lane.b32.xlu0 %v647, 8
        %v711 = vpop.permute.xlu0 %710
        %712 = vrot.lane.b32.xlu0 %v649, 8
        %v713 = vpop.permute.xlu0 %712
        %714 = vrot.lane.b32.xlu0 %v652, 8
        %v715 = vpop.permute.xlu0 %714
        %716 = vrot.lane.b32.xlu0 %v654, 8
        %v717 = vpop.permute.xlu0 %716
        %718 = vrot.lane.b32.xlu0 %v657, 8
        %v719 = vpop.permute.xlu0 %718
        %720 = vrot.lane.b32.xlu0 %v659, 8
        %v721 = vpop.permute.xlu0 %720
        %722 = vrot.lane.b32.xlu0 %v662, 8
        %v723 = vpop.permute.xlu0 %722
        %724 = vrot.lane.b32.xlu0 %v664, 8
        %v725 = vpop.permute.xlu0 %724
        %726 = vrot.lane.b32.xlu0 %v667, 8
        %v727 = vpop.permute.xlu0 %726
        %728 = vrot.lane.b32.xlu0 %v669, 8
        %v729 = vpop.permute.xlu0 %728
        %761 = vrot.lane.b32.xlu0 %v367, 12
        %v762 = vpop.permute.xlu0 %761
        %763 = vrot.lane.b32.xlu0 %v244, 12
        %v764 = vpop.permute.xlu0 %763
        %765 = vrot.lane.b32.xlu0 %v366, 12
        %v766 = vpop.permute.xlu0 %765
        %767 = vrot.lane.b32.xlu0 %v241, 12
        %v768 = vpop.permute.xlu0 %767
        %769 = vrot.lane.b32.xlu0 %v368, 12
        %v770 = vpop.permute.xlu0 %769
        %771 = vrot.lane.b32.xlu0 %v247, 12
        %v772 = vpop.permute.xlu0 %771
        %773 = vrot.lane.b32.xlu0 %v369, 12
        %v774 = vpop.permute.xlu0 %773
        %775 = vrot.lane.b32.xlu0 %v250, 12
        %v776 = vpop.permute.xlu0 %775
        %777 = vrot.lane.b32.xlu0 %v370, 12
        %v778 = vpop.permute.xlu0 %777
        %779 = vrot.lane.b32.xlu0 %v253, 12
        %v780 = vpop.permute.xlu0 %779
        %781 = vrot.lane.b32.xlu0 %v371, 12
        %v782 = vpop.permute.xlu0 %781
        %783 = vrot.lane.b32.xlu0 %v256, 12
        %v784 = vpop.permute.xlu0 %783
        %785 = vrot.lane.b32.xlu0 %v372, 12
        %v786 = vpop.permute.xlu0 %785
        %787 = vrot.lane.b32.xlu0 %v259, 12
        %v788 = vpop.permute.xlu0 %787
        %789 = vrot.lane.b32.xlu0 %v373, 12
        %v790 = vpop.permute.xlu0 %789
        %791 = vrot.lane.b32.xlu0 %v262, 12
        %v792 = vpop.permute.xlu0 %791
        %793 = vrot.lane.b32.xlu0 %v374, 12
        %v794 = vpop.permute.xlu0 %793
        %795 = vrot.lane.b32.xlu0 %v265, 12
        %v796 = vpop.permute.xlu0 %795
        %797 = vrot.lane.b32.xlu0 %v375, 12
        %v798 = vpop.permute.xlu0 %797
        %799 = vrot.lane.b32.xlu0 %v268, 12
        %v800 = vpop.permute.xlu0 %799
        %801 = vrot.lane.b32.xlu0 %v376, 12
        %v802 = vpop.permute.xlu0 %801
        %803 = vrot.lane.b32.xlu0 %v271, 12
        %v804 = vpop.permute.xlu0 %803
        %805 = vrot.lane.b32.xlu0 %v377, 12
        %v806 = vpop.permute.xlu0 %805
        %807 = vrot.lane.b32.xlu0 %v274, 12
        %v808 = vpop.permute.xlu0 %807
        %809 = vrot.lane.b32.xlu0 %v378, 12
        %v810 = vpop.permute.xlu0 %809
        %811 = vrot.lane.b32.xlu0 %v277, 12
        %v812 = vpop.permute.xlu0 %811
        %813 = vrot.lane.b32.xlu0 %v379, 12
        %v814 = vpop.permute.xlu0 %813
        %815 = vrot.lane.b32.xlu0 %v280, 12
        %v816 = vpop.permute.xlu0 %815
        %817 = vrot.lane.b32.xlu0 %v380, 12
        %v818 = vpop.permute.xlu0 %817
        %819 = vrot.lane.b32.xlu0 %v283, 12
        %v820 = vpop.permute.xlu0 %819
        %821 = vrot.lane.b32.xlu0 %v381, 12
        %v822 = vpop.permute.xlu0 %821
        %823 = vrot.lane.b32.xlu0 %v286, 12
        %v824 = vpop.permute.xlu0 %823
        %v858 = vrot.slane %v381, 1
        %v859 = vrot.slane %v286, 1
        %v860 = vsel %vm428, %v858, %v859
        %v861 = vrot.slane %v397, 1
        %v862 = vsel %vm428, %v859, %v861
        %863 = vrot.lane.b32.xlu0 %v436, 16
        %v864 = vpop.permute.xlu0 %863
        %865 = vrot.lane.b32.xlu0 %v438, 16
        %v866 = vpop.permute.xlu0 %865
        %867 = vrot.lane.b32.xlu0 %v431, 16
        %v868 = vpop.permute.xlu0 %867
        %869 = vrot.lane.b32.xlu0 %v433, 16
        %v870 = vpop.permute.xlu0 %869
        %871 = vrot.lane.b32.xlu0 %v441, 16
        %v872 = vpop.permute.xlu0 %871
        %873 = vrot.lane.b32.xlu0 %v443, 16
        %v874 = vpop.permute.xlu0 %873
        %875 = vrot.lane.b32.xlu0 %v446, 16
        %v876 = vpop.permute.xlu0 %875
        %877 = vrot.lane.b32.xlu0 %v448, 16
        %v878 = vpop.permute.xlu0 %877
        %879 = vrot.lane.b32.xlu0 %v451, 16
        %v880 = vpop.permute.xlu0 %879
        %881 = vrot.lane.b32.xlu0 %v453, 16
        %v882 = vpop.permute.xlu0 %881
        %883 = vrot.lane.b32.xlu0 %v456, 16
        %v884 = vpop.permute.xlu0 %883
        %885 = vrot.lane.b32.xlu0 %v458, 16
        %v886 = vpop.permute.xlu0 %885
        %887 = vrot.lane.b32.xlu0 %v461, 16
        %v888 = vpop.permute.xlu0 %887
        %889 = vrot.lane.b32.xlu0 %v463, 16
        %v890 = vpop.permute.xlu0 %889
        %891 = vrot.lane.b32.xlu0 %v466, 16
        %v892 = vpop.permute.xlu0 %891
        %893 = vrot.lane.b32.xlu0 %v468, 16
        %v894 = vpop.permute.xlu0 %893
        %895 = vrot.lane.b32.xlu0 %v471, 16
        %v896 = vpop.permute.xlu0 %895
        %897 = vrot.lane.b32.xlu0 %v473, 16
        %v898 = vpop.permute.xlu0 %897
        %899 = vrot.lane.b32.xlu0 %v476, 16
        %v900 = vpop.permute.xlu0 %899
        %901 = vrot.lane.b32.xlu0 %v478, 16
        %v902 = vpop.permute.xlu0 %901
        %903 = vrot.lane.b32.xlu0 %v481, 16
        %v904 = vpop.permute.xlu0 %903
        %905 = vrot.lane.b32.xlu0 %v483, 16
        %v906 = vpop.permute.xlu0 %905
        %907 = vrot.lane.b32.xlu0 %v486, 16
        %v908 = vpop.permute.xlu0 %907
        %909 = vrot.lane.b32.xlu0 %v488, 16
        %v910 = vpop.permute.xlu0 %909
        %911 = vrot.lane.b32.xlu0 %v491, 16
        %v912 = vpop.permute.xlu0 %911
        %913 = vrot.lane.b32.xlu0 %v493, 16
        %v914 = vpop.permute.xlu0 %913
        %915 = vrot.lane.b32.xlu0 %v496, 16
        %v916 = vpop.permute.xlu0 %915
        %917 = vrot.lane.b32.xlu0 %v498, 16
        %v918 = vpop.permute.xlu0 %917
        %919 = vrot.lane.b32.xlu0 %v501, 16
        %v920 = vpop.permute.xlu0 %919
        %921 = vrot.lane.b32.xlu0 %v503, 16
        %v922 = vpop.permute.xlu0 %921
        %923 = vrot.lane.b32.xlu0 %v860, 16
        %v924 = vpop.permute.xlu0 %923
        %925 = vrot.lane.b32.xlu0 %v862, 16
        %v926 = vpop.permute.xlu0 %925
        %v959 = vrot.slane %v381, 2
        %v960 = vrot.slane %v286, 2
        %v961 = vsel %vm594, %v959, %v960
        %v962 = vrot.slane %v397, 2
        %v963 = vsel %vm594, %v960, %v962
        %964 = vrot.lane.b32.xlu0 %v602, 20
        %v965 = vpop.permute.xlu0 %964
        %966 = vrot.lane.b32.xlu0 %v604, 20
        %v967 = vpop.permute.xlu0 %966
        %968 = vrot.lane.b32.xlu0 %v597, 20
        %v969 = vpop.permute.xlu0 %968
        %970 = vrot.lane.b32.xlu0 %v599, 20
        %v971 = vpop.permute.xlu0 %970
        %972 = vrot.lane.b32.xlu0 %v607, 20
        %v973 = vpop.permute.xlu0 %972
        %974 = vrot.lane.b32.xlu0 %v609, 20
        %v975 = vpop.permute.xlu0 %974
        %976 = vrot.lane.b32.xlu0 %v612, 20
        %v977 = vpop.permute.xlu0 %976
        %978 = vrot.lane.b32.xlu0 %v614, 20
        %v979 = vpop.permute.xlu0 %978
        %980 = vrot.lane.b32.xlu0 %v617, 20
        %v981 = vpop.permute.xlu0 %980
        %982 = vrot.lane.b32.xlu0 %v619, 20
        %v983 = vpop.permute.xlu0 %982
        %984 = vrot.lane.b32.xlu0 %v622, 20
        %v985 = vpop.permute.xlu0 %984
        %986 = vrot.lane.b32.xlu0 %v624, 20
        %v987 = vpop.permute.xlu0 %986
        %988 = vrot.lane.b32.xlu0 %v627, 20
        %v989 = vpop.permute.xlu0 %988
        %990 = vrot.lane.b32.xlu0 %v629, 20
        %v991 = vpop.permute.xlu0 %990
        %992 = vrot.lane.b32.xlu0 %v632, 20
        %v993 = vpop.permute.xlu0 %992
        %994 = vrot.lane.b32.xlu0 %v634, 20
        %v995 = vpop.permute.xlu0 %994
        %996 = vrot.lane.b32.xlu0 %v637, 20
        %v997 = vpop.permute.xlu0 %996
        %998 = vrot.lane.b32.xlu0 %v639, 20
        %v999 = vpop.permute.xlu0 %998
        %1000 = vrot.lane.b32.xlu0 %v642, 20
        %v1001 = vpop.permute.xlu0 %1000
        %1002 = vrot.lane.b32.xlu0 %v644, 20
        %v1003 = vpop.permute.xlu0 %1002
        %1004 = vrot.lane.b32.xlu0 %v647, 20
        %v1005 = vpop.permute.xlu0 %1004
        %1006 = vrot.lane.b32.xlu0 %v649, 20
        %v1007 = vpop.permute.xlu0 %1006
        %1008 = vrot.lane.b32.xlu0 %v652, 20
        %v1009 = vpop.permute.xlu0 %1008
        %1010 = vrot.lane.b32.xlu0 %v654, 20
        %v1011 = vpop.permute.xlu0 %1010
        %1012 = vrot.lane.b32.xlu0 %v657, 20
        %v1013 = vpop.permute.xlu0 %1012
        %1014 = vrot.lane.b32.xlu0 %v659, 20
        %v1015 = vpop.permute.xlu0 %1014
        %1016 = vrot.lane.b32.xlu0 %v662, 20
        %v1017 = vpop.permute.xlu0 %1016
        %1018 = vrot.lane.b32.xlu0 %v664, 20
        %v1019 = vpop.permute.xlu0 %1018
        %1020 = vrot.lane.b32.xlu0 %v667, 20
        %v1021 = vpop.permute.xlu0 %1020
        %1022 = vrot.lane.b32.xlu0 %v669, 20
        %v1023 = vpop.permute.xlu0 %1022
        %1024 = vrot.lane.b32.xlu0 %v961, 20
        %v1025 = vpop.permute.xlu0 %1024
        %1026 = vrot.lane.b32.xlu0 %v963, 20
        %v1027 = vpop.permute.xlu0 %1026
        %1060 = vrot.lane.b32.xlu0 %v366, 24
        %v1061 = vpop.permute.xlu0 %1060
        %1062 = vrot.lane.b32.xlu0 %v241, 24
        %v1063 = vpop.permute.xlu0 %1062
        %1064 = vrot.lane.b32.xlu0 %v368, 24
        %v1065 = vpop.permute.xlu0 %1064
        %1066 = vrot.lane.b32.xlu0 %v247, 24
        %v1067 = vpop.permute.xlu0 %1066
        %1068 = vrot.lane.b32.xlu0 %v369, 24
        %v1069 = vpop.permute.xlu0 %1068
        %1070 = vrot.lane.b32.xlu0 %v250, 24
        %v1071 = vpop.permute.xlu0 %1070
        %1072 = vrot.lane.b32.xlu0 %v370, 24
        %v1073 = vpop.permute.xlu0 %1072
        %1074 = vrot.lane.b32.xlu0 %v253, 24
        %v1075 = vpop.permute.xlu0 %1074
        %1076 = vrot.lane.b32.xlu0 %v371, 24
        %v1077 = vpop.permute.xlu0 %1076
        %1078 = vrot.lane.b32.xlu0 %v256, 24
        %v1079 = vpop.permute.xlu0 %1078
        %1080 = vrot.lane.b32.xlu0 %v372, 24
        %v1081 = vpop.permute.xlu0 %1080
        %1082 = vrot.lane.b32.xlu0 %v259, 24
        %v1083 = vpop.permute.xlu0 %1082
        %1084 = vrot.lane.b32.xlu0 %v373, 24
        %v1085 = vpop.permute.xlu0 %1084
        %1086 = vrot.lane.b32.xlu0 %v262, 24
        %v1087 = vpop.permute.xlu0 %1086
        %1088 = vrot.lane.b32.xlu0 %v374, 24
        %v1089 = vpop.permute.xlu0 %1088
        %1090 = vrot.lane.b32.xlu0 %v265, 24
        %v1091 = vpop.permute.xlu0 %1090
        %1092 = vrot.lane.b32.xlu0 %v375, 24
        %v1093 = vpop.permute.xlu0 %1092
        %1094 = vrot.lane.b32.xlu0 %v268, 24
        %v1095 = vpop.permute.xlu0 %1094
        %1096 = vrot.lane.b32.xlu0 %v376, 24
        %v1097 = vpop.permute.xlu0 %1096
        %1098 = vrot.lane.b32.xlu0 %v271, 24
        %v1099 = vpop.permute.xlu0 %1098
        %1100 = vrot.lane.b32.xlu0 %v377, 24
        %v1101 = vpop.permute.xlu0 %1100
        %1102 = vrot.lane.b32.xlu0 %v274, 24
        %v1103 = vpop.permute.xlu0 %1102
        %1104 = vrot.lane.b32.xlu0 %v378, 24
        %v1105 = vpop.permute.xlu0 %1104
        %1106 = vrot.lane.b32.xlu0 %v277, 24
        %v1107 = vpop.permute.xlu0 %1106
        %1108 = vrot.lane.b32.xlu0 %v379, 24
        %v1109 = vpop.permute.xlu0 %1108
        %1110 = vrot.lane.b32.xlu0 %v280, 24
        %v1111 = vpop.permute.xlu0 %1110
        %1112 = vrot.lane.b32.xlu0 %v380, 24
        %v1113 = vpop.permute.xlu0 %1112
        %1114 = vrot.lane.b32.xlu0 %v283, 24
        %v1115 = vpop.permute.xlu0 %1114
        %1116 = vrot.lane.b32.xlu0 %v381, 24
        %v1117 = vpop.permute.xlu0 %1116
        %1118 = vrot.lane.b32.xlu0 %v286, 24
        %v1119 = vpop.permute.xlu0 %1118
        %1150 = vrot.lane.b32.xlu0 %v431, 28
        %v1151 = vpop.permute.xlu0 %1150
        %1152 = vrot.lane.b32.xlu0 %v433, 28
        %v1153 = vpop.permute.xlu0 %1152
        %1154 = vrot.lane.b32.xlu0 %v441, 28
        %v1155 = vpop.permute.xlu0 %1154
        %1156 = vrot.lane.b32.xlu0 %v443, 28
        %v1157 = vpop.permute.xlu0 %1156
        %1158 = vrot.lane.b32.xlu0 %v446, 28
        %v1159 = vpop.permute.xlu0 %1158
        %1160 = vrot.lane.b32.xlu0 %v448, 28
        %v1161 = vpop.permute.xlu0 %1160
        %1162 = vrot.lane.b32.xlu0 %v451, 28
        %v1163 = vpop.permute.xlu0 %1162
        %1164 = vrot.lane.b32.xlu0 %v453, 28
        %v1165 = vpop.permute.xlu0 %1164
        %1166 = vrot.lane.b32.xlu0 %v456, 28
        %v1167 = vpop.permute.xlu0 %1166
        %1168 = vrot.lane.b32.xlu0 %v458, 28
        %v1169 = vpop.permute.xlu0 %1168
        %1170 = vrot.lane.b32.xlu0 %v461, 28
        %v1171 = vpop.permute.xlu0 %1170
        %1172 = vrot.lane.b32.xlu0 %v463, 28
        %v1173 = vpop.permute.xlu0 %1172
        %1174 = vrot.lane.b32.xlu0 %v466, 28
        %v1175 = vpop.permute.xlu0 %1174
        %1176 = vrot.lane.b32.xlu0 %v468, 28
        %v1177 = vpop.permute.xlu0 %1176
        %1178 = vrot.lane.b32.xlu0 %v471, 28
        %v1179 = vpop.permute.xlu0 %1178
        %1180 = vrot.lane.b32.xlu0 %v473, 28
        %v1181 = vpop.permute.xlu0 %1180
        %1182 = vrot.lane.b32.xlu0 %v476, 28
        %v1183 = vpop.permute.xlu0 %1182
        %1184 = vrot.lane.b32.xlu0 %v478, 28
        %v1185 = vpop.permute.xlu0 %1184
        %1186 = vrot.lane.b32.xlu0 %v481, 28
        %v1187 = vpop.permute.xlu0 %1186
        %1188 = vrot.lane.b32.xlu0 %v483, 28
        %v1189 = vpop.permute.xlu0 %1188
        %1190 = vrot.lane.b32.xlu0 %v486, 28
        %v1191 = vpop.permute.xlu0 %1190
        %1192 = vrot.lane.b32.xlu0 %v488, 28
        %v1193 = vpop.permute.xlu0 %1192
        %1194 = vrot.lane.b32.xlu0 %v491, 28
        %v1195 = vpop.permute.xlu0 %1194
        %1196 = vrot.lane.b32.xlu0 %v493, 28
        %v1197 = vpop.permute.xlu0 %1196
        %1198 = vrot.lane.b32.xlu0 %v496, 28
        %v1199 = vpop.permute.xlu0 %1198
        %1200 = vrot.lane.b32.xlu0 %v498, 28
        %v1201 = vpop.permute.xlu0 %1200
        %1202 = vrot.lane.b32.xlu0 %v501, 28
        %v1203 = vpop.permute.xlu0 %1202
        %1204 = vrot.lane.b32.xlu0 %v503, 28
        %v1205 = vpop.permute.xlu0 %1204
        %1206 = vrot.lane.b32.xlu0 %v860, 28
        %v1207 = vpop.permute.xlu0 %1206
        %1208 = vrot.lane.b32.xlu0 %v862, 28
        %v1209 = vpop.permute.xlu0 %1208
        %1240 = vrot.lane.b32.xlu0 %v597, 32
        %v1241 = vpop.permute.xlu0 %1240
        %1242 = vrot.lane.b32.xlu0 %v599, 32
        %v1243 = vpop.permute.xlu0 %1242
        %1244 = vrot.lane.b32.xlu0 %v607, 32
        %v1245 = vpop.permute.xlu0 %1244
        %1246 = vrot.lane.b32.xlu0 %v609, 32
        %v1247 = vpop.permute.xlu0 %1246
        %1248 = vrot.lane.b32.xlu0 %v612, 32
        %v1249 = vpop.permute.xlu0 %1248
        %1250 = vrot.lane.b32.xlu0 %v614, 32
        %v1251 = vpop.permute.xlu0 %1250
        %1252 = vrot.lane.b32.xlu0 %v617, 32
        %v1253 = vpop.permute.xlu0 %1252
        %1254 = vrot.lane.b32.xlu0 %v619, 32
        %v1255 = vpop.permute.xlu0 %1254
        %1256 = vrot.lane.b32.xlu0 %v622, 32
        %v1257 = vpop.permute.xlu0 %1256
        %1258 = vrot.lane.b32.xlu0 %v624, 32
        %v1259 = vpop.permute.xlu0 %1258
        %1260 = vrot.lane.b32.xlu0 %v627, 32
        %v1261 = vpop.permute.xlu0 %1260
        %1262 = vrot.lane.b32.xlu0 %v629, 32
        %v1263 = vpop.permute.xlu0 %1262
        %1264 = vrot.lane.b32.xlu0 %v632, 32
        %v1265 = vpop.permute.xlu0 %1264
        %1266 = vrot.lane.b32.xlu0 %v634, 32
        %v1267 = vpop.permute.xlu0 %1266
        %1268 = vrot.lane.b32.xlu0 %v637, 32
        %v1269 = vpop.permute.xlu0 %1268
        %1270 = vrot.lane.b32.xlu0 %v639, 32
        %v1271 = vpop.permute.xlu0 %1270
        %1272 = vrot.lane.b32.xlu0 %v642, 32
        %v1273 = vpop.permute.xlu0 %1272
        %1274 = vrot.lane.b32.xlu0 %v644, 32
        %v1275 = vpop.permute.xlu0 %1274
        %1276 = vrot.lane.b32.xlu0 %v647, 32
        %v1277 = vpop.permute.xlu0 %1276
        %1278 = vrot.lane.b32.xlu0 %v649, 32
        %v1279 = vpop.permute.xlu0 %1278
        %1280 = vrot.lane.b32.xlu0 %v652, 32
        %v1281 = vpop.permute.xlu0 %1280
        %1282 = vrot.lane.b32.xlu0 %v654, 32
        %v1283 = vpop.permute.xlu0 %1282
        %1284 = vrot.lane.b32.xlu0 %v657, 32
        %v1285 = vpop.permute.xlu0 %1284
        %1286 = vrot.lane.b32.xlu0 %v659, 32
        %v1287 = vpop.permute.xlu0 %1286
        %1288 = vrot.lane.b32.xlu0 %v662, 32
        %v1289 = vpop.permute.xlu0 %1288
        %1290 = vrot.lane.b32.xlu0 %v664, 32
        %v1291 = vpop.permute.xlu0 %1290
        %1292 = vrot.lane.b32.xlu0 %v667, 32
        %v1293 = vpop.permute.xlu0 %1292
        %1294 = vrot.lane.b32.xlu0 %v669, 32
        %v1295 = vpop.permute.xlu0 %1294
        %1296 = vrot.lane.b32.xlu0 %v961, 32
        %v1297 = vpop.permute.xlu0 %1296
        %1298 = vrot.lane.b32.xlu0 %v963, 32
        %v1299 = vpop.permute.xlu0 %1298
        %vm1330 = vcmask 31744
        %v1331 = vsel %vm1330, %v366, %v505
        %v1332 = vsel %vm1330, %v241, %v507
        %v1333 = vsel %vm1330, %v367, %v509
        %v1334 = vsel %vm1330, %v244, %v511
        %v1335 = vsel %vm1330, %v368, %v513
        %v1336 = vsel %vm1330, %v247, %v515
        %v1337 = vsel %vm1330, %v369, %v517
        %v1338 = vsel %vm1330, %v250, %v519
        %v1339 = vsel %vm1330, %v370, %v521
        %v1340 = vsel %vm1330, %v253, %v523
        %v1341 = vsel %vm1330, %v371, %v525
        %v1342 = vsel %vm1330, %v256, %v527
        %v1343 = vsel %vm1330, %v372, %v529
        %v1344 = vsel %vm1330, %v259, %v531
        %v1345 = vsel %vm1330, %v373, %v533
        %v1346 = vsel %vm1330, %v262, %v535
        %v1347 = vsel %vm1330, %v374, %v537
        %v1348 = vsel %vm1330, %v265, %v539
        %v1349 = vsel %vm1330, %v375, %v541
        %v1350 = vsel %vm1330, %v268, %v543
        %v1351 = vsel %vm1330, %v376, %v545
        %v1352 = vsel %vm1330, %v271, %v547
        %v1353 = vsel %vm1330, %v377, %v549
        %v1354 = vsel %vm1330, %v274, %v551
        %v1355 = vsel %vm1330, %v378, %v553
        %v1356 = vsel %vm1330, %v277, %v555
        %v1357 = vsel %vm1330, %v379, %v557
        %v1358 = vsel %vm1330, %v280, %v559
        %v1359 = vsel %vm1330, %v380, %v561
        %v1360 = vsel %vm1330, %v283, %v563
        %vm1361 = vcmask 64512
        %v1362 = vsel %vm1361, %v1331, %v671
        %v1363 = vsel %vm1361, %v1332, %v673
        %v1364 = vsel %vm1361, %v1333, %v675
        %v1365 = vsel %vm1361, %v1334, %v677
        %v1366 = vsel %vm1361, %v1335, %v679
        %v1367 = vsel %vm1361, %v1336, %v681
        %v1368 = vsel %vm1361, %v1337, %v683
        %v1369 = vsel %vm1361, %v1338, %v685
        %v1370 = vsel %vm1361, %v1339, %v687
        %v1371 = vsel %vm1361, %v1340, %v689
        %v1372 = vsel %vm1361, %v1341, %v691
        %v1373 = vsel %vm1361, %v1342, %v693
        %v1374 = vsel %vm1361, %v1343, %v695
        %v1375 = vsel %vm1361, %v1344, %v697
        %v1376 = vsel %vm1361, %v1345, %v699
        %v1377 = vsel %vm1361, %v1346, %v701
        %v1378 = vsel %vm1361, %v1347, %v703
        %v1379 = vsel %vm1361, %v1348, %v705
        %v1380 = vsel %vm1361, %v1349, %v707
        %v1381 = vsel %vm1361, %v1350, %v709
        %v1382 = vsel %vm1361, %v1351, %v711
        %v1383 = vsel %vm1361, %v1352, %v713
        %v1384 = vsel %vm1361, %v1353, %v715
        %v1385 = vsel %vm1361, %v1354, %v717
        %v1386 = vsel %vm1361, %v1355, %v719
        %v1387 = vsel %vm1361, %v1356, %v721
        %v1388 = vsel %vm1361, %v1357, %v723
        %v1389 = vsel %vm1361, %v1358, %v725
        %v1390 = vsel %vm1361, %v1359, %v727
        %v1391 = vsel %vm1361, %v1360, %v729
        %vm1392 = vcmask 97280
        %v1393 = vsel %vm1392, %v1362, %v762
        %v1394 = vsel %vm1392, %v1363, %v764
        %v1395 = vsel %vm1392, %v1364, %v766
        %v1396 = vsel %vm1392, %v1365, %v768
        %v1397 = vsel %vm1392, %v1362, %v770
        %v1398 = vsel %vm1392, %v1363, %v772
        %v1399 = vsel %vm1392, %v1366, %v774
        %v1400 = vsel %vm1392, %v1367, %v776
        %v1401 = vsel %vm1392, %v1368, %v778
        %v1402 = vsel %vm1392, %v1369, %v780
        %v1403 = vsel %vm1392, %v1370, %v782
        %v1404 = vsel %vm1392, %v1371, %v784
        %v1405 = vsel %vm1392, %v1372, %v786
        %v1406 = vsel %vm1392, %v1373, %v788
        %v1407 = vsel %vm1392, %v1374, %v790
        %v1408 = vsel %vm1392, %v1375, %v792
        %v1409 = vsel %vm1392, %v1376, %v794
        %v1410 = vsel %vm1392, %v1377, %v796
        %v1411 = vsel %vm1392, %v1378, %v798
        %v1412 = vsel %vm1392, %v1379, %v800
        %v1413 = vsel %vm1392, %v1380, %v802
        %v1414 = vsel %vm1392, %v1381, %v804
        %v1415 = vsel %vm1392, %v1382, %v806
        %v1416 = vsel %vm1392, %v1383, %v808
        %v1417 = vsel %vm1392, %v1384, %v810
        %v1418 = vsel %vm1392, %v1385, %v812
        %v1419 = vsel %vm1392, %v1386, %v814
        %v1420 = vsel %vm1392, %v1387, %v816
        %v1421 = vsel %vm1392, %v1388, %v818
        %v1422 = vsel %vm1392, %v1389, %v820
        %v1423 = vsel %vm1392, %v1390, %v822
        %v1424 = vsel %vm1392, %v1391, %v824
        %vm1425 = vcmask 130048
        %v1426 = vsel %vm1425, %v1393, %v864
        %v1427 = vsel %vm1425, %v1394, %v866
        %v1428 = vsel %vm1425, %v1395, %v868
        %v1429 = vsel %vm1425, %v1396, %v870
        %v1430 = vsel %vm1425, %v1397, %v872
        %v1431 = vsel %vm1425, %v1398, %v874
        %v1432 = vsel %vm1425, %v1399, %v876
        %v1433 = vsel %vm1425, %v1400, %v878
        %v1434 = vsel %vm1425, %v1401, %v880
        %v1435 = vsel %vm1425, %v1402, %v882
        %v1436 = vsel %vm1425, %v1403, %v884
        %v1437 = vsel %vm1425, %v1404, %v886
        %v1438 = vsel %vm1425, %v1405, %v888
        %v1439 = vsel %vm1425, %v1406, %v890
        %v1440 = vsel %vm1425, %v1407, %v892
        %v1441 = vsel %vm1425, %v1408, %v894
        %v1442 = vsel %vm1425, %v1409, %v896
        %v1443 = vsel %vm1425, %v1410, %v898
        %v1444 = vsel %vm1425, %v1411, %v900
        %v1445 = vsel %vm1425, %v1412, %v902
        %v1446 = vsel %vm1425, %v1413, %v904
        %v1447 = vsel %vm1425, %v1414, %v906
        %v1448 = vsel %vm1425, %v1415, %v908
        %v1449 = vsel %vm1425, %v1416, %v910
        %v1450 = vsel %vm1425, %v1417, %v912
        %v1451 = vsel %vm1425, %v1418, %v914
        %v1452 = vsel %vm1425, %v1419, %v916
        %v1453 = vsel %vm1425, %v1420, %v918
        %v1454 = vsel %vm1425, %v1421, %v920
        %v1455 = vsel %vm1425, %v1422, %v922
        %v1456 = vsel %vm1425, %v1423, %v924
        %v1457 = vsel %vm1425, %v1424, %v926
        %vm1458 = vcmask 162816
        %v1459 = vsel %vm1458, %v1426, %v965
        %v1460 = vsel %vm1458, %v1427, %v967
        %v1461 = vsel %vm1458, %v1428, %v969
        %v1462 = vsel %vm1458, %v1429, %v971
        %v1463 = vsel %vm1458, %v1430, %v973
        %v1464 = vsel %vm1458, %v1431, %v975
        %v1465 = vsel %vm1458, %v1432, %v977
        %v1466 = vsel %vm1458, %v1433, %v979
        %v1467 = vsel %vm1458, %v1434, %v981
        %v1468 = vsel %vm1458, %v1435, %v983
        %v1469 = vsel %vm1458, %v1436, %v985
        %v1470 = vsel %vm1458, %v1437, %v987
        %v1471 = vsel %vm1458, %v1438, %v989
        %v1472 = vsel %vm1458, %v1439, %v991
        %v1473 = vsel %vm1458, %v1440, %v993
        %v1474 = vsel %vm1458, %v1441, %v995
        %v1475 = vsel %vm1458, %v1442, %v997
        %v1476 = vsel %vm1458, %v1443, %v999
        %v1477 = vsel %vm1458, %v1444, %v1001
        %v1478 = vsel %vm1458, %v1445, %v1003
        %v1479 = vsel %vm1458, %v1446, %v1005
        %v1480 = vsel %vm1458, %v1447, %v1007
        %v1481 = vsel %vm1458, %v1448, %v1009
        %v1482 = vsel %vm1458, %v1449, %v1011
        %v1483 = vsel %vm1458, %v1450, %v1013
        %v1484 = vsel %vm1458, %v1451, %v1015
        %v1485 = vsel %vm1458, %v1452, %v1017
        %v1486 = vsel %vm1458, %v1453, %v1019
        %v1487 = vsel %vm1458, %v1454, %v1021
        %v1488 = vsel %vm1458, %v1455, %v1023
        %v1489 = vsel %vm1458, %v1456, %v1025
        %v1490 = vsel %vm1458, %v1457, %v1027
        %vm1491 = vcmask 195584
        %v1492 = vsel %vm1491, %v1459, %v1061
        %v1493 = vsel %vm1491, %v1460, %v1063
        %v1494 = vsel %vm1491, %v1461, %v1065
        %v1495 = vsel %vm1491, %v1462, %v1067
        %v1496 = vsel %vm1491, %v1463, %v1069
        %v1497 = vsel %vm1491, %v1464, %v1071
        %v1498 = vsel %vm1491, %v1465, %v1073
        %v1499 = vsel %vm1491, %v1466, %v1075
        %v1500 = vsel %vm1491, %v1467, %v1077
        %v1501 = vsel %vm1491, %v1468, %v1079
        %v1502 = vsel %vm1491, %v1469, %v1081
        %v1503 = vsel %vm1491, %v1470, %v1083
        %v1504 = vsel %vm1491, %v1471, %v1085
        %v1505 = vsel %vm1491, %v1472, %v1087
        %v1506 = vsel %vm1491, %v1473, %v1089
        %v1507 = vsel %vm1491, %v1474, %v1091
        %v1508 = vsel %vm1491, %v1475, %v1093
        %v1509 = vsel %vm1491, %v1476, %v1095
        %v1510 = vsel %vm1491, %v1477, %v1097
        %v1511 = vsel %vm1491, %v1478, %v1099
        %v1512 = vsel %vm1491, %v1479, %v1101
        %v1513 = vsel %vm1491, %v1480, %v1103
        %v1514 = vsel %vm1491, %v1481, %v1105
        %v1515 = vsel %vm1491, %v1482, %v1107
        %v1516 = vsel %vm1491, %v1483, %v1109
        %v1517 = vsel %vm1491, %v1484, %v1111
        %v1518 = vsel %vm1491, %v1485, %v1113
        %v1519 = vsel %vm1491, %v1486, %v1115
        %v1520 = vsel %vm1491, %v1487, %v1117
        %v1521 = vsel %vm1491, %v1488, %v1119
        %v1522 = vsel %vm1491, %v1489, %v1113
        %v1523 = vsel %vm1491, %v1490, %v1115
        %vm1524 = vcmask 228352
        %v1525 = vsel %vm1524, %v1492, %v1151
        %v1526 = vsel %vm1524, %v1493, %v1153
        %v1527 = vsel %vm1524, %v1494, %v1155
        %v1528 = vsel %vm1524, %v1495, %v1157
        %v1529 = vsel %vm1524, %v1496, %v1159
        %v1530 = vsel %vm1524, %v1497, %v1161
        %v1531 = vsel %vm1524, %v1498, %v1163
        %v1532 = vsel %vm1524, %v1499, %v1165
        %v1533 = vsel %vm1524, %v1500, %v1167
        %v1534 = vsel %vm1524, %v1501, %v1169
        %v1535 = vsel %vm1524, %v1502, %v1171
        %v1536 = vsel %vm1524, %v1503, %v1173
        %v1537 = vsel %vm1524, %v1504, %v1175
        %v1538 = vsel %vm1524, %v1505, %v1177
        %v1539 = vsel %vm1524, %v1506, %v1179
        %v1540 = vsel %vm1524, %v1507, %v1181
        %v1541 = vsel %vm1524, %v1508, %v1183
        %v1542 = vsel %vm1524, %v1509, %v1185
        %v1543 = vsel %vm1524, %v1510, %v1187
        %v1544 = vsel %vm1524, %v1511, %v1189
        %v1545 = vsel %vm1524, %v1512, %v1191
        %v1546 = vsel %vm1524, %v1513, %v1193
        %v1547 = vsel %vm1524, %v1514, %v1195
        %v1548 = vsel %vm1524, %v1515, %v1197
        %v1549 = vsel %vm1524, %v1516, %v1199
        %v1550 = vsel %vm1524, %v1517, %v1201
        %v1551 = vsel %vm1524, %v1518, %v1203
        %v1552 = vsel %vm1524, %v1519, %v1205
        %v1553 = vsel %vm1524, %v1520, %v1207
        %v1554 = vsel %vm1524, %v1521, %v1209
        %v1555 = vsel %vm1524, %v1522, %v1203
        %v1556 = vsel %vm1524, %v1523, %v1205
        %vm1557 = vcmask 261120
        %v1558 = vsel %vm1557, %v1525, %v1241
        %v1559 = vsel %vm1557, %v1526, %v1243
        %v1560 = vsel %vm1557, %v1527, %v1245
        %v1561 = vsel %vm1557, %v1528, %v1247
        %v1562 = vsel %vm1557, %v1529, %v1249
        %v1563 = vsel %vm1557, %v1530, %v1251
        %v1564 = vsel %vm1557, %v1531, %v1253
        %v1565 = vsel %vm1557, %v1532, %v1255
        %v1566 = vsel %vm1557, %v1533, %v1257
        %v1567 = vsel %vm1557, %v1534, %v1259
        %v1568 = vsel %vm1557, %v1535, %v1261
        %v1569 = vsel %vm1557, %v1536, %v1263
        %v1570 = vsel %vm1557, %v1537, %v1265
        %v1571 = vsel %vm1557, %v1538, %v1267
        %v1572 = vsel %vm1557, %v1539, %v1269
        %v1573 = vsel %vm1557, %v1540, %v1271
        %v1574 = vsel %vm1557, %v1541, %v1273
        %v1575 = vsel %vm1557, %v1542, %v1275
        %v1576 = vsel %vm1557, %v1543, %v1277
        %v1577 = vsel %vm1557, %v1544, %v1279
        %v1578 = vsel %vm1557, %v1545, %v1281
        %v1579 = vsel %vm1557, %v1546, %v1283
        %v1580 = vsel %vm1557, %v1547, %v1285
        %v1581 = vsel %vm1557, %v1548, %v1287
        %v1582 = vsel %vm1557, %v1549, %v1289
        %v1583 = vsel %vm1557, %v1550, %v1291
        %v1584 = vsel %vm1557, %v1551, %v1293
        %v1585 = vsel %vm1557, %v1552, %v1295
        %v1586 = vsel %vm1557, %v1553, %v1297
        %v1587 = vsel %vm1557, %v1554, %v1299
        %v1588 = vsel %vm1557, %v1555, %v1293
        %v1589 = vsel %vm1557, %v1556, %v1295
        %v1590 = vld [vmem:[%s1] sm:$0xff]
        %v1591 = vld [vmem:[%s1 + $0x8] sm:$0xff]
        %v1592 = vld [vmem:[%s1 + $0x10] sm:$0xff]
        %v1593 = vld [vmem:[%s1 + $0x18] sm:$0xff]
        %v1594 = vld [vmem:[%s1 + $0x20] sm:$0xf]
        %vm1595 = vcmask 293888
        %v1597 = vsel %vm1595, %v1558, 0
        %v1600 = vsel %vm1595, %v1559, 0
        %v1603 = vsel %vm1595, %v1560, 0
        %v1606 = vsel %vm1595, %v1561, 0
        %v1609 = vsel %vm1595, %v1562, 0
        %v1612 = vsel %vm1595, %v1563, 0
        %v1615 = vsel %vm1595, %v1564, 0
        %v1618 = vsel %vm1595, %v1565, 0
        %v1621 = vsel %vm1595, %v1566, 0
        %v1624 = vsel %vm1595, %v1567, 0
        %v1627 = vsel %vm1595, %v1568, 0
        %v1630 = vsel %vm1595, %v1569, 0
        %v1633 = vsel %vm1595, %v1570, 0
        %v1636 = vsel %vm1595, %v1571, 0
        %v1639 = vsel %vm1595, %v1572, 0
        %v1642 = vsel %vm1595, %v1573, 0
        %v1645 = vsel %vm1595, %v1574, 0
        %v1648 = vsel %vm1595, %v1575, 0
        %v1651 = vsel %vm1595, %v1576, 0
        %v1654 = vsel %vm1595, %v1577, 0
        %v1657 = vsel %vm1595, %v1578, 0
        %v1660 = vsel %vm1595, %v1579, 0
        %v1663 = vsel %vm1595, %v1580, 0
        %v1666 = vsel %vm1595, %v1581, 0
        %v1669 = vsel %vm1595, %v1582, 0
        %v1672 = vsel %vm1595, %v1583, 0
        %v1675 = vsel %vm1595, %v1584, 0
        %v1678 = vsel %vm1595, %v1585, 0
        %v1681 = vsel %vm1595, %v1586, 0
        %v1684 = vsel %vm1595, %v1587, 0
        %v1687 = vsel %vm1595, %v1588, 0
        %v1690 = vsel %vm1595, %v1589, 0
        %vm1692 = vcmask 1043456
        %v1694 = vsel %vm1692, %v1594, 0
        %1696 = vmatpush.msra.mxu0 0.0
        %1697 = vmatpush.msra.mxu0 0.0
        %1698 = vmatpush.msra.mxu0 0.0
        %1699 = vmatpush.msra.mxu0 0.0
        %1700 = vmatpush.msra.mxu0 0.0
        %1701 = vmatpush.msra.mxu0 0.0
        %1702 = vmatpush.msra.mxu0 0.0
        %1703 = vmatpush.msra.mxu0 0.0
        %1704 = vmatpush.msra.mxu0 0.0
        %1705 = vmatpush.msra.mxu0 0.0
        %1706 = vmatpush.msra.mxu0 0.0
        %1707 = vmatpush.msra.mxu0 %v1694
        %1708 = vmatpush.msra.mxu0 %v1593
        %1709 = vmatpush.msra.mxu0 %v1592
        %1710 = vmatpush.msra.mxu0 %v1591
        %1711 = vmatpush.msra.mxu0 %v1590
        %1712 = vmatmul.f32.gmra.mxu0 %v1597
        %v1713 = vpop.f32.mrf.mxu0
        %v1714 = vadd.f32 0.0, %v1713
        %1715 = vmatmul.f32.gmra.mxu0 %v1600
        %v1716 = vpop.f32.mrf.mxu0
        %v1717 = vadd.f32 0.0, %v1716
        %1718 = vmatmul.f32.gmra.mxu0 %v1603
        %v1719 = vpop.f32.mrf.mxu0
        %v1720 = vadd.f32 0.0, %v1719
        %1721 = vmatmul.f32.gmra.mxu0 %v1606
        %v1722 = vpop.f32.mrf.mxu0
        %v1723 = vadd.f32 0.0, %v1722
        %1724 = vmatmul.f32.gmra.mxu0 %v1609
        %v1725 = vpop.f32.mrf.mxu0
        %v1726 = vadd.f32 0.0, %v1725
        %1727 = vmatmul.f32.gmra.mxu0 %v1612
        %v1728 = vpop.f32.mrf.mxu0
        %v1729 = vadd.f32 0.0, %v1728
        %1730 = vmatmul.f32.gmra.mxu0 %v1615
        %v1731 = vpop.f32.mrf.mxu0
        %v1732 = vadd.f32 0.0, %v1731
        %1733 = vmatmul.f32.gmra.mxu0 %v1618
        %v1734 = vpop.f32.mrf.mxu0
        %v1735 = vadd.f32 0.0, %v1734
        %1736 = vmatmul.f32.gmra.mxu0 %v1621
        %v1737 = vpop.f32.mrf.mxu0
        %v1738 = vadd.f32 0.0, %v1737
        %1739 = vmatmul.f32.gmra.mxu0 %v1624
        %v1740 = vpop.f32.mrf.mxu0
        %v1741 = vadd.f32 0.0, %v1740
        %1742 = vmatmul.f32.gmra.mxu0 %v1627
        %v1743 = vpop.f32.mrf.mxu0
        %v1744 = vadd.f32 0.0, %v1743
        %1745 = vmatmul.f32.gmra.mxu0 %v1630
        %v1746 = vpop.f32.mrf.mxu0
        %v1747 = vadd.f32 0.0, %v1746
        %1748 = vmatmul.f32.gmra.mxu0 %v1633
        %v1749 = vpop.f32.mrf.mxu0
        %v1750 = vadd.f32 0.0, %v1749
        %1751 = vmatmul.f32.gmra.mxu0 %v1636
        %v1752 = vpop.f32.mrf.mxu0
        %v1753 = vadd.f32 0.0, %v1752
        %1754 = vmatmul.f32.gmra.mxu0 %v1639
        %v1755 = vpop.f32.mrf.mxu0
        %v1756 = vadd.f32 0.0, %v1755
        %1757 = vmatmul.f32.gmra.mxu0 %v1642
        %v1758 = vpop.f32.mrf.mxu0
        %v1759 = vadd.f32 0.0, %v1758
        %1760 = vmatmul.f32.gmra.mxu0 %v1645
        %v1761 = vpop.f32.mrf.mxu0
        %v1762 = vadd.f32 0.0, %v1761
        %1763 = vmatmul.f32.gmra.mxu0 %v1648
        %v1764 = vpop.f32.mrf.mxu0
        %v1765 = vadd.f32 0.0, %v1764
        %1766 = vmatmul.f32.gmra.mxu0 %v1651
        %v1767 = vpop.f32.mrf.mxu0
        %v1768 = vadd.f32 0.0, %v1767
        %1769 = vmatmul.f32.gmra.mxu0 %v1654
        %v1770 = vpop.f32.mrf.mxu0
        %v1771 = vadd.f32 0.0, %v1770
        %1772 = vmatmul.f32.gmra.mxu0 %v1657
        %v1773 = vpop.f32.mrf.mxu0
        %v1774 = vadd.f32 0.0, %v1773
        %1775 = vmatmul.f32.gmra.mxu0 %v1660
        %v1776 = vpop.f32.mrf.mxu0
        %v1777 = vadd.f32 0.0, %v1776
        %1778 = vmatmul.f32.gmra.mxu0 %v1663
        %v1779 = vpop.f32.mrf.mxu0
        %v1780 = vadd.f32 0.0, %v1779
        %1781 = vmatmul.f32.gmra.mxu0 %v1666
        %v1782 = vpop.f32.mrf.mxu0
        %v1783 = vadd.f32 0.0, %v1782
        %1784 = vmatmul.f32.gmra.mxu0 %v1669
        %v1785 = vpop.f32.mrf.mxu0
        %v1786 = vadd.f32 0.0, %v1785
        %1787 = vmatmul.f32.gmra.mxu0 %v1672
        %v1788 = vpop.f32.mrf.mxu0
        %v1789 = vadd.f32 0.0, %v1788
        %1790 = vmatmul.f32.gmra.mxu0 %v1675
        %v1791 = vpop.f32.mrf.mxu0
        %v1792 = vadd.f32 0.0, %v1791
        %1793 = vmatmul.f32.gmra.mxu0 %v1678
        %v1794 = vpop.f32.mrf.mxu0
        %v1795 = vadd.f32 0.0, %v1794
        %1796 = vmatmul.f32.gmra.mxu0 %v1681
        %v1797 = vpop.f32.mrf.mxu0
        %v1798 = vadd.f32 0.0, %v1797
        %1799 = vmatmul.f32.gmra.mxu0 %v1684
        %v1800 = vpop.f32.mrf.mxu0
        %v1801 = vadd.f32 0.0, %v1800
        %1802 = vmatmul.f32.gmra.mxu0 %v1687
        %v1803 = vpop.f32.mrf.mxu0
        %v1804 = vadd.f32 0.0, %v1803
        %1805 = vmatmul.f32.gmra.mxu0 %v1690
        %v1806 = vpop.f32.mrf.mxu0
        %v1807 = vadd.f32 0.0, %v1806
        %1808 = vdwg.mxu0
        %1809 = vxpose.xlu0.b32.start [1/16] %v1714, 128
        %1810 = vxpose.xlu0.b32.cont [2/16] %v1717, 128
        %1811 = vxpose.xlu0.b32.cont [3/16] %v1720, 128
        %1812 = vxpose.xlu0.b32.cont [4/16] %v1723, 128
        %1813 = vxpose.xlu0.b32.cont [5/16] %v1726, 128
        %1814 = vxpose.xlu0.b32.cont [6/16] %v1729, 128
        %1815 = vxpose.xlu0.b32.cont [7/16] %v1732, 128
        %1816 = vxpose.xlu0.b32.cont [8/16] %v1735, 128
        %1817 = vxpose.xlu0.b32.cont [9/16] %v1738, 128
        %1818 = vxpose.xlu0.b32.cont [10/16] %v1741, 128
        %1819 = vxpose.xlu0.b32.cont [11/16] %v1744, 128
        %1820 = vxpose.xlu0.b32.cont [12/16] %v1747, 128
        %1821 = vxpose.xlu0.b32.cont [13/16] %v1750, 128
        %1822 = vxpose.xlu0.b32.cont [14/16] %v1753, 128
        %1823 = vxpose.xlu0.b32.cont [15/16] %v1756, 128
        %1824 = vxpose.xlu0.b32.end [16/16] %v1759, 128
        %v1825 = vpop.trf.xlu0
        %v1826 = vpop.trf.xlu0
        %v1827 = vpop.trf.xlu0
        %v1828 = vpop.trf.xlu0
        %v1829 = vpop.trf.xlu0
        %v1830 = vpop.trf.xlu0
        %v1831 = vpop.trf.xlu0
        %v1832 = vpop.trf.xlu0
        %v1833 = vpop.trf.xlu0
        %v1834 = vpop.trf.xlu0
        %v1835 = vpop.trf.xlu0
        %v1836 = vpop.trf.xlu0
        %v1837 = vpop.trf.xlu0
        %v1838 = vpop.trf.xlu0
        %v1839 = vpop.trf.xlu0
        %v1840 = vpop.trf.xlu0
        %1841 = vxpose.xlu0.b32.start [1/16] %v1762, 128
        %1842 = vxpose.xlu0.b32.cont [2/16] %v1765, 128
        %1843 = vxpose.xlu0.b32.cont [3/16] %v1768, 128
        %1844 = vxpose.xlu0.b32.cont [4/16] %v1771, 128
        %1845 = vxpose.xlu0.b32.cont [5/16] %v1774, 128
        %1846 = vxpose.xlu0.b32.cont [6/16] %v1777, 128
        %1847 = vxpose.xlu0.b32.cont [7/16] %v1780, 128
        %1848 = vxpose.xlu0.b32.cont [8/16] %v1783, 128
        %1849 = vxpose.xlu0.b32.cont [9/16] %v1786, 128
        %1850 = vxpose.xlu0.b32.cont [10/16] %v1789, 128
        %1851 = vxpose.xlu0.b32.cont [11/16] %v1792, 128
        %1852 = vxpose.xlu0.b32.cont [12/16] %v1795, 128
        %1853 = vxpose.xlu0.b32.cont [13/16] %v1798, 128
        %1854 = vxpose.xlu0.b32.cont [14/16] %v1801, 128
        %1855 = vxpose.xlu0.b32.cont [15/16] %v1804, 128
        %1856 = vxpose.xlu0.b32.end [16/16] %v1807, 128
        %v1857 = vpop.trf.xlu0
        %v1858 = vpop.trf.xlu0
        %v1859 = vpop.trf.xlu0
        %v1860 = vpop.trf.xlu0
        %v1861 = vpop.trf.xlu0
        %v1862 = vpop.trf.xlu0
        %v1863 = vpop.trf.xlu0
        %v1864 = vpop.trf.xlu0
        %v1865 = vpop.trf.xlu0
        %v1866 = vpop.trf.xlu0
        %v1867 = vpop.trf.xlu0
        %v1868 = vpop.trf.xlu0
        %v1869 = vpop.trf.xlu0
        %v1870 = vpop.trf.xlu0
        %v1871 = vpop.trf.xlu0
        %v1872 = vpop.trf.xlu0
        %1873 = vst [vmem:[%s136] sm:$0xff] %v1825
        %1874 = vst [vmem:[%s136 + $0x8] sm:$0xff] %v1857
        %s1875 = sand.u32 %s71, 1
        %s1876 = scalar_lea.sflag [#allocation3], %s1875
        %s1877 = sand.u32 %s71, 1
        %s1878 = smul.addr %s1877, 16
        %s1879 = scalar_lea.vmem [#allocation2], %s1878
        // Predicated region
        $region29: #{tpu_custom_call.1} parent=27 // pred_check
          %p1880 = pneg %p81
        $region30: #{tpu_custom_call.1} parent=27 // pred_check_branch
          %1882 = sbr.rel (%p1880) target = $region32
        $region31: #{tpu_custom_call.1} parent=27 // pred_region
          %1884 = vsyncadd %s1876, 0
          %s1885 = smul.addr %s16, 2
          %s1886 = smul.addr %s1885, 8
          %s1887 = scalar_lea.hbm %s2, %s1886
          %s1889 = sshll.u32 %s1879, 4
          %s1890 = int_to_ptr.vmem [resolvable:$true] %s1889
          %s1891 = sshll.u32 %s1887, 4
          %s1892 = int_to_ptr.hbm [resolvable:$true] %s1891
          %1894 = dma.vmem_to_hbm [thread:$0]  %s1890, 256, %s1892, %s1876
        $region32: #{tpu_custom_call.1} parent=27 // pred_fallthru
          _
      $region28: #{tpu_custom_call.1} parent=5 // pred_fallthru
        _
      %p1895 = scmp.le.s32.totalorder 2, %s11
      // Predicated region
      $region33: #{tpu_custom_call.1} parent=5 // pred_check
        %p1896 = pneg %p1895
      $region34: #{tpu_custom_call.1} parent=5 // pred_check_branch
        %1898 = sbr.rel (%p1896) target = $region36
      $region35: #{tpu_custom_call.1} parent=5 // pred_region
        %s1899 = ssub.s32 %s11, 2
        // Predicated region
        $region37: #{tpu_custom_call.1} parent=35 // pred_check
          %p1900 = pneg %p87
        $region38: #{tpu_custom_call.1} parent=35 // pred_check_branch
          %1902 = sbr.rel (%p1900) target = $region40
        $region39: #{tpu_custom_call.1} parent=35 // pred_region
          %s1903 = sand.u32 %s72, 1
          %s1904 = scalar_lea.sflag [#allocation3], %s1903
          %s1905 = sand.u32 %s72, 1
          %s1906 = smul.addr %s1905, 16
          %s1907 = scalar_lea.vmem [#allocation2], %s1906
          %1909 = dma.done %s1904, 256
        $region40: #{tpu_custom_call.1} parent=35 // pred_fallthru
          _
      $region36: #{tpu_custom_call.1} parent=5 // pred_fallthru
        _
    $region6: #{tpu_custom_call.1} parent=1 // loop_footer
      %s15 = sadd.s32 1, %s11
    $region7: #{tpu_custom_call.1} parent=1 // loop_footer_branch
      %10 = sbr.rel target = $region3
    $region8: #{tpu_custom_call.1} parent=1 // loop_exit
      _
    %1910 = vsyncpa [#allocation3], 1
    %s1911 = scalar_lea.sflag [#allocation3], 1
    %1912 = vsyncpa %s1911, 1

</llo_original>
